<compile_context>
chip_gen: v6e
topology: v6e:2x2x1
jax: 0.10.0
libtpu: 0.0.40
codegen_flags: <defaults>
</compile_context>

<pallas_src>
import functools

import jax
import jax.numpy as jnp
from jax.experimental import pallas as pl
from jax.experimental.pallas import tpu as pltpu


# ----------------------------------------------------------------------------
# Kernel 1: per-tile partial sum / sum-of-squares of y = conv1x1(x)
#           (channel-major: y_tile = w1t @ x_tile + b1).
# Partial outputs (instead of a resident accumulator) let both grid axes be
# "parallel"; the tiny partial reduction is finished in plain JAX.
# ----------------------------------------------------------------------------
def _conv_stats_kernel(x_ref, w1t_ref, b1_ref, psum_ref, psq_ref, *, dhw):
    l = pl.program_id(1)
    tl = x_ref.shape[2]
    x = x_ref[0]                                                   # (Cin, tl)
    y = jnp.dot(w1t_ref[...], x,
                preferred_element_type=jnp.float32) + b1_ref[...]  # (Cout, tl)
    # Mask the tail tile (tl may not divide D*H*W); padded reads are garbage.
    lane = jax.lax.broadcasted_iota(jnp.int32, (1, tl), 1) + l * tl
    y = jnp.where(lane < dhw, y, 0.0)
    psum_ref[...] = jnp.sum(y, axis=1, keepdims=True)[None, None]      # (1,1,Cout,1)
    psq_ref[...] = jnp.sum(y * y, axis=1, keepdims=True)[None, None]   # (1,1,Cout,1)


def conv_stats(x3, w1t, b1, *, tl):
    N, Cin, DHW = x3.shape
    Cout = w1t.shape[0]
    num_l = pl.cdiv(DHW, tl)
    return pl.pallas_call(
        functools.partial(_conv_stats_kernel, dhw=DHW),
        out_shape=(
            jax.ShapeDtypeStruct((N, num_l, Cout, 1), jnp.float32),
            jax.ShapeDtypeStruct((N, num_l, Cout, 1), jnp.float32),
        ),
        grid_spec=pltpu.PrefetchScalarGridSpec(
            num_scalar_prefetch=0,
            grid=(N, num_l),
            in_specs=[
                pl.BlockSpec((1, Cin, tl), lambda n, l: (n, 0, l)),
                pl.BlockSpec((Cout, Cin), lambda n, l: (0, 0)),
                pl.BlockSpec((Cout, 1), lambda n, l: (0, 0)),
            ],
            out_specs=(
                pl.BlockSpec((1, 1, Cout, 1), lambda n, l: (n, l, 0, 0)),
                pl.BlockSpec((1, 1, Cout, 1), lambda n, l: (n, l, 0, 0)),
            ),
        ),
        compiler_params=pltpu.CompilerParams(
            dimension_semantics=("parallel", "parallel")),
    )(x3, w1t, b1)


# ----------------------------------------------------------------------------
# Kernel 2 (fused): recompute y = conv1x1(x), apply BN (scale/shift with 1/D
# folded in) + ReLU, pool over D in-kernel, then the four branch 1x1x1 convs
# as one (4*Cout, Cout) matmul.  Output block last dim is HW (lane-dense).
# ----------------------------------------------------------------------------
def _fused_bn_pool_branch_kernel(x_ref, w1t_ref, b1_ref, scale_ref, shift_ref,
                                 wbt_ref, bbt_ref, o_ref, *, d):
    x = x_ref[0]                                                   # (Cin, D*HW)
    y = jnp.dot(w1t_ref[...], x,
                preferred_element_type=jnp.float32) + b1_ref[...]  # (Cout, D*HW)
    # scale/shift already include the 1/D pooling factor: relu(v)/D == relu(v/D)
    v = jnp.maximum(y * scale_ref[...] + shift_ref[...], 0.0)
    cout, dhw = v.shape
    pooled = jnp.sum(v.reshape(cout, d, dhw // d), axis=1)         # (Cout, HW)
    out = jnp.dot(wbt_ref[...], pooled,
                  preferred_element_type=jnp.float32) + bbt_ref[...]   # (4C, HW)
    o_ref[...] = out[None].astype(o_ref.dtype)


def fused_bn_pool_branch(x3, w1t, b1, scale_d, shift_d, wbt, bbt, *, d):
    N, Cin, DHW = x3.shape
    Cout = w1t.shape[0]
    C4 = wbt.shape[0]
    HW = DHW // d
    return pl.pallas_call(
        functools.partial(_fused_bn_pool_branch_kernel, d=d),
        out_shape=jax.ShapeDtypeStruct((N, C4, HW), jnp.float32),
        grid_spec=pltpu.PrefetchScalarGridSpec(
            num_scalar_prefetch=0,
            grid=(N,),
            in_specs=[
                pl.BlockSpec((1, Cin, DHW), lambda n: (n, 0, 0)),
                pl.BlockSpec((Cout, Cin), lambda n: (0, 0)),
                pl.BlockSpec((Cout, 1), lambda n: (0, 0)),
                pl.BlockSpec((Cout, 1), lambda n: (0, 0)),
                pl.BlockSpec((Cout, 1), lambda n: (0, 0)),
                pl.BlockSpec((C4, Cout), lambda n: (0, 0)),
                pl.BlockSpec((C4, 1), lambda n: (0, 0)),
            ],
            out_specs=pl.BlockSpec((1, C4, HW), lambda n: (n, 0, 0)),
        ),
        compiler_params=pltpu.CompilerParams(dimension_semantics=("parallel",)),
    )(x3, w1t, b1, scale_d, shift_d, wbt, bbt)


# ----------------------------------------------------------------------------
# Full ESP3DBlock forward (glue + the two Pallas kernels).
# ----------------------------------------------------------------------------
def esp3d_block_forward(x, params, *, eps=1e-5):
    # x: (N, C_in, D, H, W)  -- PyTorch NCDHW; no transpose needed (channel-major).
    N, Cin, D, H, W = x.shape
    Cout = params["w1t"].shape[0]
    HW = H * W
    DHW = D * HW
    x3 = x.reshape(N, Cin, DHW)

    # Pass 1: batch statistics of the 1x1x1 conv output (training-mode BN).
    tl = DHW if DHW <= 4096 else 4096
    psum, psq = conv_stats(x3, params["w1t"], params["b1"], tl=tl)
    M = N * DHW
    sum_y = jnp.sum(psum, axis=(0, 1, 3))
    sq_y = jnp.sum(psq, axis=(0, 1, 3))
    mean = sum_y / M
    # guard E[y^2]-E[y]^2 cancellation against tiny negatives
    var = jnp.maximum(sq_y / M - mean * mean, 0.0)
    scale = params["gamma"] / jnp.sqrt(var + eps)
    shift = params["beta"] - mean * scale
    # fold the 1/D adaptive-avg-pool factor into the affine BN params
    scale_d = (scale / D).reshape(Cout, 1)
    shift_d = (shift / D).reshape(Cout, 1)

    # Pass 2: fused conv-recompute + BN + ReLU + pool-over-D + 4 branch convs.
    out3 = fused_bn_pool_branch(x3, params["w1t"], params["b1"], scale_d,
                                shift_d, params["wBt"], params["bBt"], d=D)
    return out3.reshape(N, 4 * Cout, 1, H, W)


# ----------------------------------------------------------------------------
# Pure-JAX reference (for correctness checking only).
# ----------------------------------------------------------------------------
def esp3d_block_reference(x, params, *, eps=1e-5):
    N, Cin, D, H, W = x.shape
    Cout = params["w1t"].shape[0]
    x_cl = jnp.transpose(x, (0, 2, 3, 4, 1))                     # (N,D,H,W,Cin)
    y = x_cl @ params["w1t"].T + params["b1"][:, 0]              # (N,D,H,W,Cout)
    mean = jnp.mean(y, axis=(0, 1, 2, 3))
    var = jnp.mean((y - mean) ** 2, axis=(0, 1, 2, 3))
    yn = (y - mean) / jnp.sqrt(var + eps) * params["gamma"] + params["beta"]
    yr = jnp.maximum(yn, 0.0)
    pooled = jnp.mean(yr, axis=1)                                # (N,H,W,Cout)
    out = pooled @ params["wBt"].T + params["bBt"][:, 0]         # (N,H,W,4C)
    out = jnp.transpose(out, (0, 3, 1, 2)).reshape(N, 4 * Cout, 1, H, W)
    return out


def init_params(key, cin, cout, n_branches=4):
    k1, k2, k3, k4, k5, k6 = jax.random.split(key, 6)
    # Conv3d(cin, cout, k=1): weight stored as (cout, cin), bias (cout, 1)
    w1t = jax.random.normal(k1, (cout, cin), jnp.float32) * 0.2
    b1 = jax.random.normal(k2, (cout, 1), jnp.float32) * 0.1
    # 4 x Conv3d(cout, cout, k=1), fused into one (4*cout, cout) matmul
    wBt = jax.random.normal(k3, (n_branches * cout, cout), jnp.float32) * 0.2
    bBt = jax.random.normal(k4, (n_branches * cout, 1), jnp.float32) * 0.1
    # BatchNorm3d affine params
    gamma = 1.0 + 0.1 * jax.random.normal(k5, (cout,), jnp.float32)
    beta = 0.1 * jax.random.normal(k6, (cout,), jnp.float32)
    return dict(w1t=w1t, b1=b1, wBt=wBt, bBt=bBt, gamma=gamma, beta=beta)


if __name__ == "__main__":
    N, Cin, Cout, D, H, W = 2, 4, 8, 4, 16, 16
    key = jax.random.PRNGKey(0)
    kx, kp = jax.random.split(key)
    x = jax.random.normal(kx, (N, Cin, D, H, W), jnp.float32)
    params = init_params(kp, Cin, Cout)

    out = esp3d_block_forward(x, params)
    out = jax.block_until_ready(out)

    ref = esp3d_block_reference(x, params)
    assert out.shape == (N, 4 * Cout, 1, H, W), out.shape
    assert jnp.allclose(out, ref, rtol=1e-4, atol=1e-3), float(
        jnp.max(jnp.abs(out - ref))
    )
    print("KERNEL_OK")
</pallas_src>

<mosaic_0001>
module attributes {stable_mosaic.version = 11 : i64} {
  func.func @_conv_stats_kernel(%arg0: i32, %arg1: i32, %arg2: memref<1x4x1024xf32, #tpu.memory_space<vmem>>, %arg3: memref<8x4xf32, #tpu.memory_space<vmem>>, %arg4: memref<8x1xf32, #tpu.memory_space<vmem>>, %arg5: memref<1x1x8x1xf32, #tpu.memory_space<vmem>>, %arg6: memref<1x1x8x1xf32, #tpu.memory_space<vmem>>) attributes {dimension_semantics = [#tpu.dimension_semantics<parallel>, #tpu.dimension_semantics<parallel>], iteration_bounds = array<i64: 2, 1>, scalar_prefetch = 0 : i64, scratch_operands = 0 : i64, tpu.core_type = #tpu.core_type<tc>, window_params = [{transform_indices = @transform_0, window_bounds = array<i64: 1, 4, 1024>}, {pipeline_mode = #tpu.pipeline_mode<synchronous>, transform_indices = @transform_1, window_bounds = array<i64: 8, 4>}, {pipeline_mode = #tpu.pipeline_mode<synchronous>, transform_indices = @transform_2, window_bounds = array<i64: 8, 1>}, {transform_indices = @transform_3, window_bounds = array<i64: 1, 1, 8, 1>}, {transform_indices = @transform_4, window_bounds = array<i64: 1, 1, 8, 1>}]} {
    %c0 = arith.constant 0 : index
    %c0_0 = arith.constant 0 : index
    %c0_1 = arith.constant 0 : index
    %0 = vector.load %arg2[%c0, %c0_0, %c0_1] : memref<1x4x1024xf32, #tpu.memory_space<vmem>>, vector<1x4x1024xf32>
    %1 = vector.shape_cast %0 : vector<1x4x1024xf32> to vector<4x1024xf32>
    %c0_2 = arith.constant 0 : index
    %c0_3 = arith.constant 0 : index
    %2 = vector.load %arg3[%c0_2, %c0_3] : memref<8x4xf32, #tpu.memory_space<vmem>>, vector<8x4xf32>
    %cst = arith.constant dense<0.000000e+00> : vector<8x1024xf32>
    %3 = tpu.matmul %2, %1, %cst {dimension_numbers = #tpu.dot_dimension_numbers<[1], [0], [0], [1], [0, 0, 1, 1], [], []>} : vector<8x4xf32>, vector<4x1024xf32>, vector<8x1024xf32> -> vector<8x1024xf32>
    %c0_4 = arith.constant 0 : index
    %c0_5 = arith.constant 0 : index
    %4 = vector.load %arg4[%c0_4, %c0_5] : memref<8x1xf32, #tpu.memory_space<vmem>>, vector<8x1xf32>
    %5 = vector.broadcast %4 : vector<8x1xf32> to vector<8x1024xf32>
    %6 = arith.addf %3, %5 : vector<8x1024xf32>
    %7 = tpu.iota {dimensions = array<i32: 1>} : vector<1x1024xi32>
    %c1024_i32 = arith.constant 1024 : i32
    %8 = arith.muli %arg1, %c1024_i32 : i32
    %9 = vector.broadcast %8 : i32 to vector<1x1024xi32>
    %10 = arith.addi %7, %9 : vector<1x1024xi32>
    %c1024_i32_6 = arith.constant 1024 : i32
    %11 = vector.broadcast %c1024_i32_6 : i32 to vector<1x1024xi32>
    %12 = arith.cmpi slt, %10, %11 : vector<1x1024xi32>
    %cst_7 = arith.constant 0.000000e+00 : f32
    %13 = vector.shape_cast %12 : vector<1x1024xi1> to vector<1x1024xi1>
    %14 = vector.broadcast %13 : vector<1x1024xi1> to vector<8x1024xi1>
    %15 = vector.broadcast %cst_7 : f32 to vector<8x1024xf32>
    %16 = arith.select %14, %6, %15 : vector<8x1024xi1>, vector<8x1024xf32>
    %cst_8 = arith.constant dense<0.000000e+00> : vector<8xf32>
    %17 = vector.multi_reduction <add>, %16, %cst_8 [1] : vector<8x1024xf32> to vector<8xf32>
    %18 = vector.shape_cast %17 : vector<8xf32> to vector<8x1xf32>
    %19 = vector.shape_cast %18 : vector<8x1xf32> to vector<1x1x8x1xf32>
    %c0_9 = arith.constant 0 : index
    %c0_10 = arith.constant 0 : index
    %c0_11 = arith.constant 0 : index
    %c0_12 = arith.constant 0 : index
    %20 = vector.load %arg5[%c0_9, %c0_10, %c0_11, %c0_12] : memref<1x1x8x1xf32, #tpu.memory_space<vmem>>, vector<1x1x8x1xf32>
    tpu.vector_store %arg5[%c0_9, %c0_10, %c0_11, %c0_12], %19 {strides = array<i32>} : memref<1x1x8x1xf32, #tpu.memory_space<vmem>>, vector<1x1x8x1xf32>,
    %21 = arith.mulf %16, %16 : vector<8x1024xf32>
    %cst_13 = arith.constant dense<0.000000e+00> : vector<8xf32>
    %22 = vector.multi_reduction <add>, %21, %cst_13 [1] : vector<8x1024xf32> to vector<8xf32>
    %23 = vector.shape_cast %22 : vector<8xf32> to vector<8x1xf32>
    %24 = vector.shape_cast %23 : vector<8x1xf32> to vector<1x1x8x1xf32>
    %c0_14 = arith.constant 0 : index
    %c0_15 = arith.constant 0 : index
    %c0_16 = arith.constant 0 : index
    %c0_17 = arith.constant 0 : index
    %25 = vector.load %arg6[%c0_14, %c0_15, %c0_16, %c0_17] : memref<1x1x8x1xf32, #tpu.memory_space<vmem>>, vector<1x1x8x1xf32>
    tpu.vector_store %arg6[%c0_14, %c0_15, %c0_16, %c0_17], %24 {strides = array<i32>} : memref<1x1x8x1xf32, #tpu.memory_space<vmem>>, vector<1x1x8x1xf32>,
    return
  }
  func.func @transform_0(%arg0: i32, %arg1: i32) -> (i32, i32, i32) {
    %c0_i32 = arith.constant 0 : i32
    %c0_i32_0 = arith.constant 0 : i32
    return %arg0, %c0_i32, %arg1 : i32, i32, i32
  }
  func.func @transform_1(%arg0: i32, %arg1: i32) -> (i32, i32) {
    %c0_i32 = arith.constant 0 : i32
    %c0_i32_0 = arith.constant 0 : i32
    %c0_i32_1 = arith.constant 0 : i32
    return %c0_i32, %c0_i32_0 : i32, i32
  }
  func.func @transform_2(%arg0: i32, %arg1: i32) -> (i32, i32) {
    %c0_i32 = arith.constant 0 : i32
    %c0_i32_0 = arith.constant 0 : i32
    %c0_i32_1 = arith.constant 0 : i32
    return %c0_i32, %c0_i32_0 : i32, i32
  }
  func.func @transform_3(%arg0: i32, %arg1: i32) -> (i32, i32, i32, i32) {
    %c0_i32 = arith.constant 0 : i32
    %c0_i32_0 = arith.constant 0 : i32
    %c0_i32_1 = arith.constant 0 : i32
    return %arg0, %arg1, %c0_i32, %c0_i32_0 : i32, i32, i32, i32
  }
  func.func @transform_4(%arg0: i32, %arg1: i32) -> (i32, i32, i32, i32) {
    %c0_i32 = arith.constant 0 : i32
    %c0_i32_0 = arith.constant 0 : i32
    %c0_i32_1 = arith.constant 0 : i32
    return %arg0, %arg1, %c0_i32, %c0_i32_0 : i32, i32, i32, i32
  }
}

</mosaic_0001>

<llo_original>
// kernel: tpu_custom_call.1
$region0: #{tpu_custom_call.1}
  #allocation0 [shape = 'u32[]', space=smem, size = 0x4, offset = 0x4, fixed_abs, tag = 'smem constant byte address 0x4 - core index']
  #allocation1 [shape = 'u32[144,128]{1,0:T(1,128)}', space=vmem, size = 0x12000, scoped, tag = 'internal scratch']
  %s0 = inlined_call_operand.hbm [shape: f32[2,4,1024], index: 0, kind: input, shape index: {}]
  %s1 = inlined_call_operand.vmem [shape: f32[8,4], index: 1, kind: input, shape index: {}]
  %s2 = inlined_call_operand.vmem [shape: f32[8,1], index: 2, kind: input, shape index: {}]
  %s3 = inlined_call_operand.vmem [shape: f32[2,1,8,1], index: 3, kind: output, shape index: {0}]
  %s4 = inlined_call_operand.vmem [shape: f32[2,1,8,1], index: 4, kind: output, shape index: {1}]
  %5 = xla_tuple %s3, %s4
  %s6 = sld [smem:[#allocation0]]
  $region57: #{tpu_custom_call.1} parent=0
    _
  %s8 = ssub.s32 1, %s6
  %s9 = scalar_select 0, %s8, %s6
  $region1: #{tpu_custom_call.1} parent=0
    #allocation2 [shape = 'u8[32768]{0}', space=vmem, size = 0x8000, scoped, tag = 'input window, operand 0']
    #allocation3 [shape = 's32[2]{0}', space=sflag, size = 0x8, scoped, tag = 'scoped memory for tpu_custom_call.1']
    %10 = vsyncpa [#allocation3], 0
    %s11 = scalar_lea.sflag [#allocation3], 1
    %12 = vsyncpa %s11, 0
    loop: start=0, step=1, limit=4
    $region2: #{tpu_custom_call.1} parent=1 // loop_pre_header
      _
    $region3: #{tpu_custom_call.1} parent=1 // loop_header
      %s14 = sphi 0, %s18
      %p15 = scmp.ge.s32.totalorder %s14, 4
      %s21 = sphi 0, %s33
      %s22 = sphi 0, %s29
      %s23 = sphi 0, %s21
      %s24 = sphi 0, %s22
      %s25 = sphi 0, %s23
      %s26 = sphi 0, %s24
      %s38 = sphi 0, %s40
      %s41 = sphi 0, %s38
      %s42 = sphi 0, %s41
      %s58 = sphi 0, %s42
      %s62 = sphi 0, %s62
      %s64 = sphi 0, %s62
      %s65 = sphi 0, %s64
      %s79 = sphi 0, %s65
      %s83 = sphi 0, %s83
      %s85 = sphi 0, %s83
      %s86 = sphi 0, %s85
      %s100 = sphi 0, %s86
      %s108 = sphi 0, %s110
      %s111 = sphi 0, %s108
      %s112 = sphi 0, %s111
      %s128 = sphi 0, %s112
      %s136 = sphi 0, %s138
      %s139 = sphi 0, %s136
      %s140 = sphi 0, %s139
      %s156 = sphi 0, %s140
    $region4: #{tpu_custom_call.1} parent=1 // loop_header_branch
      %17 = sbr.rel (%p15) target = $region8
    $region5: #{tpu_custom_call.1} parent=1 // loop_body
      %s19 = ssub.s32 %s14, 1
      %s20 = ssub.s32 %s14, 2
      %s27 = sadd.s32 1, %s22
      %p28 = scmp.ge.s32.totalorder %s27, 1
      %s29 = scalar_select %p28, 0, %s27
      %s30 = sadd.s32 1, %s21
      %s31 = scalar_select %p28, %s30, %s21
      %p32 = scmp.ge.s32.totalorder %s31, 2
      %s33 = scalar_select %p32, 0, %s31
      %s34 = ssub.s32 %s21, %s33
      %s35 = ssub.s32 %s22, %s29
      %s36 = sor.u32 %s34, %s35
      %p37 = scmp.eq.s32.totalorder %s36, 0
      %s39 = sadd.s32 %s38, 1
      %s40 = scalar_select %p37, %s38, %s39
      %p43 = pneg %p37
      %p44 = scmp.eq.s32.totalorder %s14, 1
      %p45 = por %p43, %p44
      %p46 = scmp.ne.s32.totalorder %s38, %s41
      %p47 = scmp.eq.s32.totalorder %s14, 0
      %p48 = por %p46, %p47
      %p49 = scmp.ne.s32.totalorder %s38, %s41
      %p50 = scmp.eq.s32.totalorder %s19, 1
      %p51 = por %p49, %p50
      %p52 = scmp.ne.s32.totalorder %s41, %s42
      %p53 = scmp.eq.s32.totalorder %s19, 0
      %p54 = por %p52, %p53
      %p55 = scmp.ne.s32.totalorder %s41, %s42
      %p56 = scmp.eq.s32.totalorder %s20, 1
      %p57 = por %p55, %p56
      %p59 = scmp.ne.s32.totalorder %s42, %s58
      %p60 = scmp.eq.s32.totalorder %s20, 0
      %p61 = por %p59, %p60
      %s63 = sadd.s32 %s62, 1
      %p66 = scmp.eq.s32.totalorder %s14, 1
      %p67 = scmp.ne.s32.totalorder %s62, %s64
      %p68 = scmp.eq.s32.totalorder %s14, 0
      %p69 = por %p67, %p68
      %p70 = scmp.ne.s32.totalorder %s62, %s64
      %p71 = scmp.eq.s32.totalorder %s19, 1
      %p72 = por %p70, %p71
      %p73 = scmp.ne.s32.totalorder %s64, %s65
      %p74 = scmp.eq.s32.totalorder %s19, 0
      %p75 = por %p73, %p74
      %p76 = scmp.ne.s32.totalorder %s64, %s65
      %p77 = scmp.eq.s32.totalorder %s20, 1
      %p78 = por %p76, %p77
      %p80 = scmp.ne.s32.totalorder %s65, %s79
      %p81 = scmp.eq.s32.totalorder %s20, 0
      %p82 = por %p80, %p81
      %s84 = sadd.s32 %s83, 1
      %p87 = scmp.eq.s32.totalorder %s14, 1
      %p88 = scmp.ne.s32.totalorder %s83, %s85
      %p89 = scmp.eq.s32.totalorder %s14, 0
      %p90 = por %p88, %p89
      %p91 = scmp.ne.s32.totalorder %s83, %s85
      %p92 = scmp.eq.s32.totalorder %s19, 1
      %p93 = por %p91, %p92
      %p94 = scmp.ne.s32.totalorder %s85, %s86
      %p95 = scmp.eq.s32.totalorder %s19, 0
      %p96 = por %p94, %p95
      %p97 = scmp.ne.s32.totalorder %s85, %s86
      %p98 = scmp.eq.s32.totalorder %s20, 1
      %p99 = por %p97, %p98
      %p101 = scmp.ne.s32.totalorder %s86, %s100
      %p102 = scmp.eq.s32.totalorder %s20, 0
      %p103 = por %p101, %p102
      %s104 = ssub.s32 %s21, %s33
      %s105 = ssub.s32 %s22, %s29
      %s106 = sor.u32 %s104, %s105
      %p107 = scmp.eq.s32.totalorder %s106, 0
      %s109 = sadd.s32 %s108, 1
      %s110 = scalar_select %p107, %s108, %s109
      %p113 = pneg %p107
      %p114 = scmp.eq.s32.totalorder %s14, 1
      %p115 = por %p113, %p114
      %p116 = scmp.ne.s32.totalorder %s108, %s111
      %p117 = scmp.eq.s32.totalorder %s14, 0
      %p118 = por %p116, %p117
      %p119 = scmp.ne.s32.totalorder %s108, %s111
      %p120 = scmp.eq.s32.totalorder %s19, 1
      %p121 = por %p119, %p120
      %p122 = scmp.ne.s32.totalorder %s111, %s112
      %p123 = scmp.eq.s32.totalorder %s19, 0
      %p124 = por %p122, %p123
      %p125 = scmp.ne.s32.totalorder %s111, %s112
      %p126 = scmp.eq.s32.totalorder %s20, 1
      %p127 = por %p125, %p126
      %p129 = scmp.ne.s32.totalorder %s112, %s128
      %p130 = scmp.eq.s32.totalorder %s20, 0
      %p131 = por %p129, %p130
      %s132 = ssub.s32 %s21, %s33
      %s133 = ssub.s32 %s22, %s29
      %s134 = sor.u32 %s132, %s133
      %p135 = scmp.eq.s32.totalorder %s134, 0
      %s137 = sadd.s32 %s136, 1
      %s138 = scalar_select %p135, %s136, %s137
      %p141 = pneg %p135
      %p142 = scmp.eq.s32.totalorder %s14, 1
      %p143 = por %p141, %p142
      %p144 = scmp.ne.s32.totalorder %s136, %s139
      %p145 = scmp.eq.s32.totalorder %s14, 0
      %p146 = por %p144, %p145
      %p147 = scmp.ne.s32.totalorder %s136, %s139
      %p148 = scmp.eq.s32.totalorder %s19, 1
      %p149 = por %p147, %p148
      %p150 = scmp.ne.s32.totalorder %s139, %s140
      %p151 = scmp.eq.s32.totalorder %s19, 0
      %p152 = por %p150, %p151
      %p153 = scmp.ne.s32.totalorder %s139, %s140
      %p154 = scmp.eq.s32.totalorder %s20, 1
      %p155 = por %p153, %p154
      %p157 = scmp.ne.s32.totalorder %s140, %s156
      %p158 = scmp.eq.s32.totalorder %s20, 0
      %p159 = por %p157, %p158
      %p160 = scmp.le.s32.totalorder 1, %s14
      %p161 = scmp.lt.s32.totalorder %s14, 3
      %p162 = pnand %p160, %p161
      %p163 = pneg %p162
      // Predicated region
      $region9: #{tpu_custom_call.1} parent=5 // pred_check
        _
      $region10: #{tpu_custom_call.1} parent=5 // pred_check_branch
        %165 = sbr.rel (%p162) target = $region12
      $region11: #{tpu_custom_call.1} parent=5 // pred_region
        %s166 = ssub.s32 %s14, 1
        // Predicated region
        $region13: #{tpu_custom_call.1} parent=11 // pred_check
          %p167 = pneg %p75
        $region14: #{tpu_custom_call.1} parent=11 // pred_check_branch
          %169 = sbr.rel (%p167) target = $region16
        $region15: #{tpu_custom_call.1} parent=11 // pred_region
          _
        $region16: #{tpu_custom_call.1} parent=11 // pred_fallthru
          _
        // Predicated region
        $region17: #{tpu_custom_call.1} parent=11 // pred_check
          %p170 = pneg %p96
        $region18: #{tpu_custom_call.1} parent=11 // pred_check_branch
          %172 = sbr.rel (%p170) target = $region20
        $region19: #{tpu_custom_call.1} parent=11 // pred_region
          _
        $region20: #{tpu_custom_call.1} parent=11 // pred_fallthru
          _
      $region12: #{tpu_custom_call.1} parent=5 // pred_fallthru
        _
      %p173 = scmp.lt.s32.totalorder %s14, 2
      // Predicated region
      $region21: #{tpu_custom_call.1} parent=5 // pred_check
        %p174 = pneg %p173
      $region22: #{tpu_custom_call.1} parent=5 // pred_check_branch
        %176 = sbr.rel (%p174) target = $region24
      $region23: #{tpu_custom_call.1} parent=5 // pred_region
        // Predicated region
        $region25: #{tpu_custom_call.1} parent=23 // pred_check
          %p177 = pneg %p48
        $region26: #{tpu_custom_call.1} parent=23 // pred_check_branch
          %179 = sbr.rel (%p177) target = $region28
        $region27: #{tpu_custom_call.1} parent=23 // pred_region
          %s180 = sand.u32 %s38, 1
          %s181 = scalar_lea.sflag [#allocation3], %s180
          %s182 = sand.u32 %s38, 1
          %s183 = smul.addr %s182, 32
          %s184 = scalar_lea.vmem [#allocation2], %s183
          %s185 = smul.u32 8, %s22
          %s187 = ssub.s32 512, 512
          %188 = vsyncadd %s181, %s187
          %s189 = smul.addr %s21, 8
          %s190 = sadd.s32 %s185, %s189
          %s191 = smul.addr %s190, 64
          %s192 = scalar_lea.hbm %s0, %s191
          %s194 = sshll.u32 %s184, 4
          %s195 = int_to_ptr.vmem [resolvable:$true] %s194
          %197 = dma.hbm_to_vmem [thread:$0]  %s192, 512, %s195, %s181
        $region28: #{tpu_custom_call.1} parent=23 // pred_fallthru
          _
      $region24: #{tpu_custom_call.1} parent=5 // pred_fallthru
        _
      %p198 = scmp.le.s32.totalorder 1, %s14
      %p199 = scmp.lt.s32.totalorder %s14, 3
      %p200 = pnand %p198, %p199
      %p201 = pneg %p200
      // Predicated region
      $region29: #{tpu_custom_call.1} parent=5 // pred_check
        _
      $region30: #{tpu_custom_call.1} parent=5 // pred_check_branch
        %203 = sbr.rel (%p200) target = $region32
      $region31: #{tpu_custom_call.1} parent=5 // pred_region
        %s204 = ssub.s32 %s14, 1
        %s205 = sand.u32 %s41, 1
        %s206 = scalar_lea.sflag [#allocation3], %s205
        %s207 = sand.u32 %s41, 1
        %s208 = smul.addr %s207, 32
        %s209 = scalar_lea.vmem [#allocation2], %s208
        // Predicated region
        $region33: #{tpu_custom_call.1} parent=31 // pred_check
          %p210 = pneg %p54
        $region34: #{tpu_custom_call.1} parent=31 // pred_check_branch
          %212 = sbr.rel (%p210) target = $region36
        $region35: #{tpu_custom_call.1} parent=31 // pred_region
          %213 = dma.done %s206, 512
        $region36: #{tpu_custom_call.1} parent=31 // pred_fallthru
          _
        %s214 = sand.u32 %s41, 1
        %s215 = scalar_lea.sflag [#allocation3], %s214
        %s216 = sand.u32 %s41, 1
        %s217 = smul.addr %s216, 32
        %s218 = scalar_lea.vmem [#allocation2], %s217
        %p219 = pneg %p54
        %p220 = pneg %p51
        %p221 = pneg %p75
        %p222 = pneg %p72
        %p223 = pneg %p96
        %p224 = pneg %p93
        %p225 = pneg %p124
        %p226 = pneg %p121
        %p227 = scmp.lt.s32.totalorder %s23, 1
        %s228 = scalar_select %p227, %s23, 1
        %p229 = scmp.lt.s32.totalorder %s24, 0
        %s230 = scalar_select %p229, %s24, 0
        %s231 = sadd.s32 %s230, %s228
        %s232 = smul.addr %s231, 8
        %s233 = scalar_lea.vmem %s3, %s232
        %p234 = pneg %p152
        %p235 = pneg %p149
        %p236 = scmp.lt.s32.totalorder %s23, 1
        %s237 = scalar_select %p236, %s23, 1
        %p238 = scmp.lt.s32.totalorder %s24, 0
        %s239 = scalar_select %p238, %s24, 0
        %s240 = sadd.s32 %s239, %s237
        %s241 = smul.addr %s240, 8
        %s242 = scalar_lea.vmem %s4, %s241
        %s243 = smul.u32 8, %s24
        %p244 = scmp.lt.s32.totalorder %s23, 1
        %s245 = scalar_select %p244, %s23, 1
        %p246 = scmp.lt.s32.totalorder %s24, 0
        %s247 = scalar_select %p246, %s24, 0
        %s248 = sadd.s32 %s247, %s245
        %s249 = smul.addr %s248, 8
        %s250 = scalar_lea.vmem %s3, %s249
        %p251 = scmp.lt.s32.totalorder %s23, 1
        %s252 = scalar_select %p251, %s23, 1
        %p253 = scmp.lt.s32.totalorder %s24, 0
        %s254 = scalar_select %p253, %s24, 0
        %s255 = sadd.s32 %s254, %s252
        %s256 = smul.addr %s255, 8
        %s257 = scalar_lea.vmem %s4, %s256
        %v258 = vld [vmem:[%s209] sm:$0xff]
        %v259 = vld [vmem:[%s209 + $0x8] sm:$0xff]
        %v260 = vld [vmem:[%s209 + $0x10] sm:$0xff]
        %v261 = vld [vmem:[%s209 + $0x18] sm:$0xff]
        %v262 = vld [vmem:[%s1] sm:$0xff]
        %v263 = vld [vmem:[%s2] sm:$0xff]
        %265 = vset.pattern.permute.xlu0 0
        %266 = vperm.xlu0 %265, %v263
        %v267 = vpop.permute.xlu0 %266
        %v273 = vcombine.high %v258, %v258
        %v274 = vcombine.high %v259, %v259
        %v275 = vcombine.high %v260, %v260
        %v276 = vcombine.high %v261, %v261
        %vm277 = vcmask 31744
        %v279 = vsel %vm277, %v262, 0
        %vm281 = vcmask 1043456
        %v282 = vsel %vm281, %v258, 0
        %v284 = vsel %vm281, %v273, 0
        %v286 = vsel %vm281, %v259, 0
        %v288 = vsel %vm281, %v274, 0
        %v290 = vsel %vm281, %v260, 0
        %v292 = vsel %vm281, %v275, 0
        %v294 = vsel %vm281, %v261, 0
        %v296 = vsel %vm281, %v276, 0
        %298 = vmatprep.subr.mxu0 0.0
        %299 = vmatpush1.msra.mxu0 0.0
        %300 = vmatprep.subr.mxu0 0.0
        %301 = vmatpush1.msra.mxu0 0.0
        %302 = vmatprep.subr.mxu0 0.0
        %303 = vmatpush1.msra.mxu0 0.0
        %304 = vmatprep.subr.mxu0 0.0
        %305 = vmatpush1.msra.mxu0 0.0
        %306 = vmatprep.subr.mxu0 0.0
        %307 = vmatpush1.msra.mxu0 0.0
        %308 = vmatprep.subr.mxu0 0.0
        %309 = vmatpush1.msra.mxu0 0.0
        %310 = vmatprep.subr.mxu0 0.0
        %311 = vmatpush1.msra.mxu0 0.0
        %312 = vmatprep.subr.mxu0 0.0
        %313 = vmatpush1.msra.mxu0 0.0
        %314 = vmatprep.subr.mxu0 0.0
        %315 = vmatpush1.msra.mxu0 0.0
        %316 = vmatprep.subr.mxu0 0.0
        %317 = vmatpush1.msra.mxu0 0.0
        %318 = vmatprep.subr.mxu0 0.0
        %319 = vmatpush1.msra.mxu0 0.0
        %320 = vmatprep.subr.mxu0 0.0
        %321 = vmatpush1.msra.mxu0 0.0
        %322 = vmatprep.subr.mxu0 0.0
        %323 = vmatpush1.msra.mxu0 0.0
        %324 = vmatprep.subr.mxu0 0.0
        %325 = vmatpush1.msra.mxu0 0.0
        %326 = vmatprep.subr.mxu0 0.0
        %327 = vmatpush1.msra.mxu0 0.0
        %328 = vmatprep.subr.mxu0 %v284
        %329 = vmatpush1.msra.mxu0 %v282
        %330 = vmatprep.subr.mxu0 0.0
        %331 = vmatpush2.msra.mxu0 0.0
        %332 = vmatprep.subr.mxu0 0.0
        %333 = vmatpush2.msra.mxu0 0.0
        %334 = vmatprep.subr.mxu0 0.0
        %335 = vmatpush2.msra.mxu0 0.0
        %336 = vmatprep.subr.mxu0 0.0
        %337 = vmatpush2.msra.mxu0 0.0
        %338 = vmatprep.subr.mxu0 0.0
        %339 = vmatpush2.msra.mxu0 0.0
        %340 = vmatprep.subr.mxu0 0.0
        %341 = vmatpush2.msra.mxu0 0.0
        %342 = vmatprep.subr.mxu0 0.0
        %343 = vmatpush2.msra.mxu0 0.0
        %344 = vmatprep.subr.mxu0 0.0
        %345 = vmatpush2.msra.mxu0 0.0
        %346 = vmatprep.subr.mxu0 0.0
        %347 = vmatpush2.msra.mxu0 0.0
        %348 = vmatprep.subr.mxu0 0.0
        %349 = vmatpush2.msra.mxu0 0.0
        %350 = vmatprep.subr.mxu0 0.0
        %351 = vmatpush2.msra.mxu0 0.0
        %352 = vmatprep.subr.mxu0 0.0
        %353 = vmatpush2.msra.mxu0 0.0
        %354 = vmatprep.subr.mxu0 0.0
        %355 = vmatpush2.msra.mxu0 0.0
        %356 = vmatprep.subr.mxu0 0.0
        %357 = vmatpush2.msra.mxu0 0.0
        %358 = vmatprep.subr.mxu0 0.0
        %359 = vmatpush2.msra.mxu0 0.0
        %360 = vmatprep.subr.mxu0 0.0
        %361 = vmatpush2.msra.mxu0 0.0
        %362 = vmatprep.mubr.f32.mxu0 0.0
        %363 = vmatmul.mubr.f32.gmra.mxu0 %v279
        %v364 = vpop.f32.mrf.mxu0
        %v365 = vadd.f32 %v267, %v364
        %v366 = vpop.f32.mrf.mxu0
        %v367 = vadd.f32 %v267, %v366
        %368 = vdwg.mxu0
        %369 = vmatprep.subr.mxu0 0.0
        %370 = vmatpush1.msra.mxu0 0.0
        %371 = vmatprep.subr.mxu0 0.0
        %372 = vmatpush1.msra.mxu0 0.0
        %373 = vmatprep.subr.mxu0 0.0
        %374 = vmatpush1.msra.mxu0 0.0
        %375 = vmatprep.subr.mxu0 0.0
        %376 = vmatpush1.msra.mxu0 0.0
        %377 = vmatprep.subr.mxu0 0.0
        %378 = vmatpush1.msra.mxu0 0.0
        %379 = vmatprep.subr.mxu0 0.0
        %380 = vmatpush1.msra.mxu0 0.0
        %381 = vmatprep.subr.mxu0 0.0
        %382 = vmatpush1.msra.mxu0 0.0
        %383 = vmatprep.subr.mxu0 0.0
        %384 = vmatpush1.msra.mxu0 0.0
        %385 = vmatprep.subr.mxu0 0.0
        %386 = vmatpush1.msra.mxu0 0.0
        %387 = vmatprep.subr.mxu0 0.0
        %388 = vmatpush1.msra.mxu0 0.0
        %389 = vmatprep.subr.mxu0 0.0
        %390 = vmatpush1.msra.mxu0 0.0
        %391 = vmatprep.subr.mxu0 0.0
        %392 = vmatpush1.msra.mxu0 0.0
        %393 = vmatprep.subr.mxu0 0.0
        %394 = vmatpush1.msra.mxu0 0.0
        %395 = vmatprep.subr.mxu0 0.0
        %396 = vmatpush1.msra.mxu0 0.0
        %397 = vmatprep.subr.mxu0 0.0
        %398 = vmatpush1.msra.mxu0 0.0
        %399 = vmatprep.subr.mxu0 %v288
        %400 = vmatpush1.msra.mxu0 %v286
        %401 = vmatprep.subr.mxu0 0.0
        %402 = vmatpush2.msra.mxu0 0.0
        %403 = vmatprep.subr.mxu0 0.0
        %404 = vmatpush2.msra.mxu0 0.0
        %405 = vmatprep.subr.mxu0 0.0
        %406 = vmatpush2.msra.mxu0 0.0
        %407 = vmatprep.subr.mxu0 0.0
        %408 = vmatpush2.msra.mxu0 0.0
        %409 = vmatprep.subr.mxu0 0.0
        %410 = vmatpush2.msra.mxu0 0.0
        %411 = vmatprep.subr.mxu0 0.0
        %412 = vmatpush2.msra.mxu0 0.0
        %413 = vmatprep.subr.mxu0 0.0
        %414 = vmatpush2.msra.mxu0 0.0
        %415 = vmatprep.subr.mxu0 0.0
        %416 = vmatpush2.msra.mxu0 0.0
        %417 = vmatprep.subr.mxu0 0.0
        %418 = vmatpush2.msra.mxu0 0.0
        %419 = vmatprep.subr.mxu0 0.0
        %420 = vmatpush2.msra.mxu0 0.0
        %421 = vmatprep.subr.mxu0 0.0
        %422 = vmatpush2.msra.mxu0 0.0
        %423 = vmatprep.subr.mxu0 0.0
        %424 = vmatpush2.msra.mxu0 0.0
        %425 = vmatprep.subr.mxu0 0.0
        %426 = vmatpush2.msra.mxu0 0.0
        %427 = vmatprep.subr.mxu0 0.0
        %428 = vmatpush2.msra.mxu0 0.0
        %429 = vmatprep.subr.mxu0 0.0
        %430 = vmatpush2.msra.mxu0 0.0
        %431 = vmatprep.subr.mxu0 0.0
        %432 = vmatpush2.msra.mxu0 0.0
        %433 = vmatprep.mubr.f32.mxu0 0.0
        %434 = vmatmul.mubr.f32.gmra.mxu0 %v279
        %v435 = vpop.f32.mrf.mxu0
        %v436 = vadd.f32 %v267, %v435
        %v437 = vpop.f32.mrf.mxu0
        %v438 = vadd.f32 %v267, %v437
        %439 = vdwg.mxu0
        %440 = vmatprep.subr.mxu0 0.0
        %441 = vmatpush1.msra.mxu0 0.0
        %442 = vmatprep.subr.mxu0 0.0
        %443 = vmatpush1.msra.mxu0 0.0
        %444 = vmatprep.subr.mxu0 0.0
        %445 = vmatpush1.msra.mxu0 0.0
        %446 = vmatprep.subr.mxu0 0.0
        %447 = vmatpush1.msra.mxu0 0.0
        %448 = vmatprep.subr.mxu0 0.0
        %449 = vmatpush1.msra.mxu0 0.0
        %450 = vmatprep.subr.mxu0 0.0
        %451 = vmatpush1.msra.mxu0 0.0
        %452 = vmatprep.subr.mxu0 0.0
        %453 = vmatpush1.msra.mxu0 0.0
        %454 = vmatprep.subr.mxu0 0.0
        %455 = vmatpush1.msra.mxu0 0.0
        %456 = vmatprep.subr.mxu0 0.0
        %457 = vmatpush1.msra.mxu0 0.0
        %458 = vmatprep.subr.mxu0 0.0
        %459 = vmatpush1.msra.mxu0 0.0
        %460 = vmatprep.subr.mxu0 0.0
        %461 = vmatpush1.msra.mxu0 0.0
        %462 = vmatprep.subr.mxu0 0.0
        %463 = vmatpush1.msra.mxu0 0.0
        %464 = vmatprep.subr.mxu0 0.0
        %465 = vmatpush1.msra.mxu0 0.0
        %466 = vmatprep.subr.mxu0 0.0
        %467 = vmatpush1.msra.mxu0 0.0
        %468 = vmatprep.subr.mxu0 0.0
        %469 = vmatpush1.msra.mxu0 0.0
        %470 = vmatprep.subr.mxu0 %v292
        %471 = vmatpush1.msra.mxu0 %v290
        %472 = vmatprep.subr.mxu0 0.0
        %473 = vmatpush2.msra.mxu0 0.0
        %474 = vmatprep.subr.mxu0 0.0
        %475 = vmatpush2.msra.mxu0 0.0
        %476 = vmatprep.subr.mxu0 0.0
        %477 = vmatpush2.msra.mxu0 0.0
        %478 = vmatprep.subr.mxu0 0.0
        %479 = vmatpush2.msra.mxu0 0.0
        %480 = vmatprep.subr.mxu0 0.0
        %481 = vmatpush2.msra.mxu0 0.0
        %482 = vmatprep.subr.mxu0 0.0
        %483 = vmatpush2.msra.mxu0 0.0
        %484 = vmatprep.subr.mxu0 0.0
        %485 = vmatpush2.msra.mxu0 0.0
        %486 = vmatprep.subr.mxu0 0.0
        %487 = vmatpush2.msra.mxu0 0.0
        %488 = vmatprep.subr.mxu0 0.0
        %489 = vmatpush2.msra.mxu0 0.0
        %490 = vmatprep.subr.mxu0 0.0
        %491 = vmatpush2.msra.mxu0 0.0
        %492 = vmatprep.subr.mxu0 0.0
        %493 = vmatpush2.msra.mxu0 0.0
        %494 = vmatprep.subr.mxu0 0.0
        %495 = vmatpush2.msra.mxu0 0.0
        %496 = vmatprep.subr.mxu0 0.0
        %497 = vmatpush2.msra.mxu0 0.0
        %498 = vmatprep.subr.mxu0 0.0
        %499 = vmatpush2.msra.mxu0 0.0
        %500 = vmatprep.subr.mxu0 0.0
        %501 = vmatpush2.msra.mxu0 0.0
        %502 = vmatprep.subr.mxu0 0.0
        %503 = vmatpush2.msra.mxu0 0.0
        %504 = vmatprep.mubr.f32.mxu0 0.0
        %505 = vmatmul.mubr.f32.gmra.mxu0 %v279
        %v506 = vpop.f32.mrf.mxu0
        %v507 = vadd.f32 %v267, %v506
        %v508 = vpop.f32.mrf.mxu0
        %v509 = vadd.f32 %v267, %v508
        %510 = vdwg.mxu0
        %511 = vmatprep.subr.mxu0 0.0
        %512 = vmatpush1.msra.mxu0 0.0
        %513 = vmatprep.subr.mxu0 0.0
        %514 = vmatpush1.msra.mxu0 0.0
        %515 = vmatprep.subr.mxu0 0.0
        %516 = vmatpush1.msra.mxu0 0.0
        %517 = vmatprep.subr.mxu0 0.0
        %518 = vmatpush1.msra.mxu0 0.0
        %519 = vmatprep.subr.mxu0 0.0
        %520 = vmatpush1.msra.mxu0 0.0
        %521 = vmatprep.subr.mxu0 0.0
        %522 = vmatpush1.msra.mxu0 0.0
        %523 = vmatprep.subr.mxu0 0.0
        %524 = vmatpush1.msra.mxu0 0.0
        %525 = vmatprep.subr.mxu0 0.0
        %526 = vmatpush1.msra.mxu0 0.0
        %527 = vmatprep.subr.mxu0 0.0
        %528 = vmatpush1.msra.mxu0 0.0
        %529 = vmatprep.subr.mxu0 0.0
        %530 = vmatpush1.msra.mxu0 0.0
        %531 = vmatprep.subr.mxu0 0.0
        %532 = vmatpush1.msra.mxu0 0.0
        %533 = vmatprep.subr.mxu0 0.0
        %534 = vmatpush1.msra.mxu0 0.0
        %535 = vmatprep.subr.mxu0 0.0
        %536 = vmatpush1.msra.mxu0 0.0
        %537 = vmatprep.subr.mxu0 0.0
        %538 = vmatpush1.msra.mxu0 0.0
        %539 = vmatprep.subr.mxu0 0.0
        %540 = vmatpush1.msra.mxu0 0.0
        %541 = vmatprep.subr.mxu0 %v296
        %542 = vmatpush1.msra.mxu0 %v294
        %543 = vmatprep.subr.mxu0 0.0
        %544 = vmatpush2.msra.mxu0 0.0
        %545 = vmatprep.subr.mxu0 0.0
        %546 = vmatpush2.msra.mxu0 0.0
        %547 = vmatprep.subr.mxu0 0.0
        %548 = vmatpush2.msra.mxu0 0.0
        %549 = vmatprep.subr.mxu0 0.0
        %550 = vmatpush2.msra.mxu0 0.0
        %551 = vmatprep.subr.mxu0 0.0
        %552 = vmatpush2.msra.mxu0 0.0
        %553 = vmatprep.subr.mxu0 0.0
        %554 = vmatpush2.msra.mxu0 0.0
        %555 = vmatprep.subr.mxu0 0.0
        %556 = vmatpush2.msra.mxu0 0.0
        %557 = vmatprep.subr.mxu0 0.0
        %558 = vmatpush2.msra.mxu0 0.0
        %559 = vmatprep.subr.mxu0 0.0
        %560 = vmatpush2.msra.mxu0 0.0
        %561 = vmatprep.subr.mxu0 0.0
        %562 = vmatpush2.msra.mxu0 0.0
        %563 = vmatprep.subr.mxu0 0.0
        %564 = vmatpush2.msra.mxu0 0.0
        %565 = vmatprep.subr.mxu0 0.0
        %566 = vmatpush2.msra.mxu0 0.0
        %567 = vmatprep.subr.mxu0 0.0
        %568 = vmatpush2.msra.mxu0 0.0
        %569 = vmatprep.subr.mxu0 0.0
        %570 = vmatpush2.msra.mxu0 0.0
        %571 = vmatprep.subr.mxu0 0.0
        %572 = vmatpush2.msra.mxu0 0.0
        %573 = vmatprep.subr.mxu0 0.0
        %574 = vmatpush2.msra.mxu0 0.0
        %575 = vmatprep.mubr.f32.mxu0 0.0
        %576 = vmatmul.mubr.f32.gmra.mxu0 %v279
        %v577 = vpop.f32.mrf.mxu0
        %v578 = vadd.f32 %v267, %v577
        %v579 = vpop.f32.mrf.mxu0
        %v580 = vadd.f32 %v267, %v579
        %581 = vdwg.mxu0
        %v582 = vlaneseq
        %v583 = vand.u32 %v582, 127
        %v584 = vadd.s32 %v583, 128
        %v585 = vadd.s32 %v583, 256
        %v586 = vadd.s32 %v583, 384
        %v587 = vadd.s32 %v583, 512
        %v588 = vadd.s32 %v583, 640
        %v589 = vadd.s32 %v583, 768
        %v590 = vadd.s32 %v583, 896
        %s591 = smul.u32 %s24, 1024
        %v592 = vstv %s591
        %v593 = vadd.s32 %v583, %v592
        %v594 = vadd.s32 %v584, %v592
        %v595 = vadd.s32 %v585, %v592
        %v596 = vadd.s32 %v586, %v592
        %v597 = vadd.s32 %v587, %v592
        %v598 = vadd.s32 %v588, %v592
        %v599 = vadd.s32 %v589, %v592
        %v600 = vadd.s32 %v590, %v592
        %vm601 = vcmp.lt.s32.totalorder %v593, 1024
        %vm602 = vcmp.lt.s32.totalorder %v594, 1024
        %vm603 = vcmp.lt.s32.totalorder %v595, 1024
        %vm604 = vcmp.lt.s32.totalorder %v596, 1024
        %vm605 = vcmp.lt.s32.totalorder %v597, 1024
        %vm606 = vcmp.lt.s32.totalorder %v598, 1024
        %vm607 = vcmp.lt.s32.totalorder %v599, 1024
        %vm608 = vcmp.lt.s32.totalorder %v600, 1024
        %v609 = vsel %vm601, 1, 0
        %v610 = vsel %vm602, 1, 0
        %v611 = vsel %vm603, 1, 0
        %v612 = vsel %vm604, 1, 0
        %v613 = vsel %vm605, 1, 0
        %v614 = vsel %vm606, 1, 0
        %v615 = vsel %vm607, 1, 0
        %v616 = vsel %vm608, 1, 0
        %vm617 = vcmp.eq.s32.totalorder %v609, 1
        %vm618 = vcmp.eq.s32.totalorder %v610, 1
        %vm619 = vcmp.eq.s32.totalorder %v611, 1
        %vm620 = vcmp.eq.s32.totalorder %v612, 1
        %vm621 = vcmp.eq.s32.totalorder %v613, 1
        %vm622 = vcmp.eq.s32.totalorder %v614, 1
        %vm623 = vcmp.eq.s32.totalorder %v615, 1
        %vm624 = vcmp.eq.s32.totalorder %v616, 1
        %v625 = vsel %vm617, %v365, 0.0
        %v626 = vsel %vm618, %v367, 0.0
        %v627 = vsel %vm619, %v436, 0.0
        %v628 = vsel %vm620, %v438, 0.0
        %v629 = vsel %vm621, %v507, 0.0
        %v630 = vsel %vm622, %v509, 0.0
        %v631 = vsel %vm623, %v578, 0.0
        %v632 = vsel %vm624, %v580, 0.0
        %v633 = vadd.f32 %v625, %v626
        %v634 = vadd.f32 %v633, %v627
        %v635 = vadd.f32 %v634, %v628
        %v636 = vadd.f32 %v635, %v629
        %v637 = vadd.f32 %v636, %v630
        %v638 = vadd.f32 %v637, %v631
        %v639 = vadd.f32 %v638, %v632
        %640 = vadd.xlane.f32.xlu0 %v639
        %v641 = vpop.xlane.xlu0 %640
        %vm642 = vcmask 7168
        %643 = vst.msk [vmem:[%s250] sm:$0xff] %vm642, %v641
        %v644 = vmul.f32 %v625, %v625
        %v645 = vmul.f32 %v626, %v626
        %v646 = vmul.f32 %v627, %v627
        %v647 = vmul.f32 %v628, %v628
        %v648 = vmul.f32 %v629, %v629
        %v649 = vmul.f32 %v630, %v630
        %v650 = vmul.f32 %v631, %v631
        %v651 = vmul.f32 %v632, %v632
        %v652 = vadd.f32 %v644, %v645
        %v653 = vadd.f32 %v652, %v646
        %v654 = vadd.f32 %v653, %v647
        %v655 = vadd.f32 %v654, %v648
        %v656 = vadd.f32 %v655, %v649
        %v657 = vadd.f32 %v656, %v650
        %v658 = vadd.f32 %v657, %v651
        %659 = vadd.xlane.f32.xlu0 %v658
        %v660 = vpop.xlane.xlu0 %659
        %661 = vst.msk [vmem:[%s257] sm:$0xff] %vm642, %v660
        %p662 = scmp.lt.s32.totalorder %s23, 1
        %s663 = scalar_select %p662, %s23, 1
        %p664 = scmp.lt.s32.totalorder %s24, 0
        %s665 = scalar_select %p664, %s24, 0
        %s666 = sadd.s32 %s665, %s663
        %s667 = smul.addr %s666, 8
        %s668 = scalar_lea.vmem %s3, %s667
        %p669 = scmp.lt.s32.totalorder %s23, 1
        %s670 = scalar_select %p669, %s23, 1
        %p671 = scmp.lt.s32.totalorder %s24, 0
        %s672 = scalar_select %p671, %s24, 0
        %s673 = sadd.s32 %s672, %s670
        %s674 = smul.addr %s673, 8
        %s675 = scalar_lea.vmem %s4, %s674
        // Predicated region
        $region37: #{tpu_custom_call.1} parent=31 // pred_check
          %p676 = pneg %p121
        $region38: #{tpu_custom_call.1} parent=31 // pred_check_branch
          %678 = sbr.rel (%p676) target = $region40
        $region39: #{tpu_custom_call.1} parent=31 // pred_region
          _
        $region40: #{tpu_custom_call.1} parent=31 // pred_fallthru
          _
        // Predicated region
        $region41: #{tpu_custom_call.1} parent=31 // pred_check
          %p679 = pneg %p149
        $region42: #{tpu_custom_call.1} parent=31 // pred_check_branch
          %681 = sbr.rel (%p679) target = $region44
        $region43: #{tpu_custom_call.1} parent=31 // pred_region
          _
        $region44: #{tpu_custom_call.1} parent=31 // pred_fallthru
          _
      $region32: #{tpu_custom_call.1} parent=5 // pred_fallthru
        _
      %p682 = scmp.le.s32.totalorder 2, %s14
      // Predicated region
      $region45: #{tpu_custom_call.1} parent=5 // pred_check
        %p683 = pneg %p682
      $region46: #{tpu_custom_call.1} parent=5 // pred_check_branch
        %685 = sbr.rel (%p683) target = $region48
      $region47: #{tpu_custom_call.1} parent=5 // pred_region
        %s686 = ssub.s32 %s14, 2
        // Predicated region
        $region49: #{tpu_custom_call.1} parent=47 // pred_check
          %p687 = pneg %p127
        $region50: #{tpu_custom_call.1} parent=47 // pred_check_branch
          %689 = sbr.rel (%p687) target = $region52
        $region51: #{tpu_custom_call.1} parent=47 // pred_region
          %p690 = scmp.lt.s32.totalorder %s25, 1
          %s691 = scalar_select %p690, %s25, 1
          %p692 = scmp.lt.s32.totalorder %s26, 0
          %s693 = scalar_select %p692, %s26, 0
          %s694 = sadd.s32 %s693, %s691
          %s695 = smul.addr %s694, 8
          %s696 = scalar_lea.vmem %s3, %s695
        $region52: #{tpu_custom_call.1} parent=47 // pred_fallthru
          _
        // Predicated region
        $region53: #{tpu_custom_call.1} parent=47 // pred_check
          %p697 = pneg %p155
        $region54: #{tpu_custom_call.1} parent=47 // pred_check_branch
          %699 = sbr.rel (%p697) target = $region56
        $region55: #{tpu_custom_call.1} parent=47 // pred_region
          %p700 = scmp.lt.s32.totalorder %s25, 1
          %s701 = scalar_select %p700, %s25, 1
          %p702 = scmp.lt.s32.totalorder %s26, 0
          %s703 = scalar_select %p702, %s26, 0
          %s704 = sadd.s32 %s703, %s701
          %s705 = smul.addr %s704, 8
          %s706 = scalar_lea.vmem %s4, %s705
        $region56: #{tpu_custom_call.1} parent=47 // pred_fallthru
          _
      $region48: #{tpu_custom_call.1} parent=5 // pred_fallthru
        _
    $region6: #{tpu_custom_call.1} parent=1 // loop_footer
      %s18 = sadd.s32 1, %s14
    $region7: #{tpu_custom_call.1} parent=1 // loop_footer_branch
      %13 = sbr.rel target = $region3
    $region8: #{tpu_custom_call.1} parent=1 // loop_exit
      _
    %707 = vsyncpa [#allocation3], 1
    %s708 = scalar_lea.sflag [#allocation3], 1
    %709 = vsyncpa %s708, 1

</llo_original>
